<compile_context>
chip_gen: v5e
topology: v5e:2x2
jax: 0.10.0
libtpu: 0.0.40
codegen_flags: <defaults>
</compile_context>

<pallas_src>
import functools

import jax
import jax.numpy as jnp
from jax.experimental import pallas as pl
from jax.experimental.pallas import tpu as pltpu

_LANES = 128


def _focal_partial_kernel(x_ref, t_ref, out_ref, *, alpha, gamma, block_rows,
                          num_blocks, rem):
    """Per-block focal-loss partial sum.

    rem: number of valid elements in the LAST grid block (Python int), or None if
         every block is completely valid (no masking code is emitted at all).
    """
    x = x_ref[...].astype(jnp.float32)
    t = t_ref[...].astype(jnp.float32)

    # Numerically stable BCE-with-logits (same formula PyTorch uses):
    #   bce = max(x, 0) - x*t + log(1 + exp(-|x|))
    bce = jnp.maximum(x, 0.0) - x * t + jnp.log1p(jnp.exp(-jnp.abs(x)))

    pt = jnp.exp(-bce)
    q = 1.0 - pt
    if gamma == 2.0:
        modulator = q * q                       # avoid jnp.power (exp/log on EUP)
    elif float(gamma).is_integer() and gamma >= 0.0:
        modulator = jnp.ones_like(q)
        for _ in range(int(gamma)):
            modulator = modulator * q
    else:
        # Guard against log(0) in the power lowering for non-integer gamma.
        modulator = jnp.power(jnp.maximum(q, jnp.finfo(jnp.float32).tiny), gamma)

    # alpha*t + (1-alpha)*(1-t) == (1-alpha) + (2*alpha-1)*t, scalars folded here.
    alpha_factor = (1.0 - alpha) + (2.0 * alpha - 1.0) * t
    focal = alpha_factor * modulator * bce

    def _reduce(v):
        # (TR,128) -> (8,128) with VPU-only adds over aligned (8,128) groups.
        return jnp.sum(v.reshape(block_rows // 8, 8, _LANES), axis=0)

    def _masked_reduce():
        # Static in-block mask: element (r, c) of this block is valid iff
        # r*128 + c < rem.  rem is a compile-time constant; max index is
        # tr*128-1, so int32 never overflows regardless of total n.
        r = jax.lax.broadcasted_iota(jnp.int32, (block_rows, _LANES), 0)
        c = jax.lax.broadcasted_iota(jnp.int32, (block_rows, _LANES), 1)
        return _reduce(jnp.where(r * _LANES + c < rem, focal, 0.0))

    if rem is None:
        out_ref[...] = _reduce(focal)
    elif num_blocks == 1:
        out_ref[...] = _masked_reduce()
    else:
        pid = pl.program_id(0)
        last = num_blocks - 1

        @pl.when(pid != last)
        def _():
            out_ref[...] = _reduce(focal)

        @pl.when(pid == last)
        def _():
            out_ref[...] = _masked_reduce()


def focal_loss_pallas(inputs, targets, alpha=0.75, gamma=2.0, block_rows=2048):
    """Pallas TPU implementation of FocalLoss.forward (returns a scalar)."""
    x = jnp.reshape(inputs, (-1,))
    t = jnp.reshape(targets, (-1,))
    n = x.shape[0]
    if n == 0:
        # torch's mean over an empty tensor is NaN.
        return jnp.float32(jnp.nan)

    rows = pl.cdiv(n, _LANES)
    if n % _LANES:
        # Minimal pad (< 128 elements of logical padding) so the flat vector can be
        # viewed as a (rows, 128) lane-major 2-D array.  When n % 128 == 0 (the common
        # large-tensor case) this branch is skipped and the reshape below is zero-copy.
        # TODO(synk): drop this copy entirely once ragged 1-D lane blocks lower robustly.
        pad = rows * _LANES - n
        x = jnp.pad(x, (0, pad))
        t = jnp.pad(t, (0, pad))
    x2 = x.reshape(rows, _LANES)
    t2 = t.reshape(rows, _LANES)

    # Block of TR rows x 128 lanes; TR a multiple of 32 (f32/bf16/int8 min tiles),
    # capped at `block_rows`.  2048 rows = 1 MiB/block/input (f32): double-buffered
    # inputs + f32 temporaries fit every generation's default scoped VMEM.  Raise
    # block_rows (and vmem_limit_bytes) for more per-step work if desired.
    tr = max(32, min(int(block_rows), rows))
    tr = ((tr + 31) // 32) * 32
    num_blocks = pl.cdiv(rows, tr)

    # Elements logically covered by the grid vs. actually valid.  Anything beyond
    # `rem` in the last block (zero padding or out-of-bounds boundary-block rows)
    # is masked inside the kernel.
    covered = num_blocks * tr * _LANES
    rem = None if covered == n else n - (num_blocks - 1) * tr * _LANES

    kernel = functools.partial(
        _focal_partial_kernel,
        alpha=float(alpha),
        gamma=float(gamma),
        block_rows=tr,
        num_blocks=int(num_blocks),
        rem=rem,
    )

    partials = pl.pallas_call(
        kernel,
        out_shape=jax.ShapeDtypeStruct((num_blocks * 8, _LANES), jnp.float32),
        grid=(num_blocks,),
        in_specs=[
            pl.BlockSpec((tr, _LANES), lambda i: (i, 0)),
            pl.BlockSpec((tr, _LANES), lambda i: (i, 0)),
        ],
        out_specs=pl.BlockSpec((8, _LANES), lambda i: (i, 0)),
        compiler_params=pltpu.CompilerParams(
            dimension_semantics=("parallel",),
        ),
    )(x2, t2)

    return jnp.sum(partials) / jnp.float32(n)


def _focal_loss_ref(inputs, targets, alpha=0.75, gamma=2.0):
    """Pure-JAX reference mirroring the PyTorch module."""
    x = jnp.reshape(inputs, (-1,)).astype(jnp.float32)
    t = jnp.reshape(targets, (-1,)).astype(jnp.float32)
    bce = jnp.maximum(x, 0.0) - x * t + jnp.log1p(jnp.exp(-jnp.abs(x)))
    pt = jnp.exp(-bce)
    af = alpha * t + (1.0 - alpha) * (1.0 - t)
    return jnp.mean(af * (1.0 - pt) ** gamma * bce)


if __name__ == "__main__":
    key = jax.random.PRNGKey(0)
    k1, k2, k3, k4, k5, k6 = jax.random.split(key, 6)

    # Test 1: 4-D logits/targets (batch=2, channels=4, 16x16), n = 2048 (multiple of
    # 128 -> zero-copy reshape path; single boundary block masked in-kernel).
    logits1 = jax.random.normal(k1, (2, 4, 16, 16), dtype=jnp.float32) * 2.0
    targets1 = (jax.random.uniform(k2, (2, 4, 16, 16)) > 0.5).astype(jnp.float32)
    out1 = jax.block_until_ready(focal_loss_pallas(logits1, targets1))
    ref1 = _focal_loss_ref(logits1, targets1)
    assert jnp.allclose(out1, ref1, rtol=1e-4, atol=1e-6), (out1, ref1)

    # Test 2: 1-D logits, N = 257 not a multiple of 128 (exercises the minimal-pad
    # path + in-kernel tail mask).
    N2 = 257
    logits2 = jax.random.normal(k3, (N2,), dtype=jnp.float32) * 2.0
    targets2 = (jax.random.uniform(k4, (N2,)) > 0.5).astype(jnp.float32)
    out2 = jax.block_until_ready(focal_loss_pallas(logits2, targets2))
    ref2 = _focal_loss_ref(logits2, targets2)
    assert jnp.allclose(out2, ref2, rtol=1e-4, atol=1e-6), (out2, ref2)

    # Test 3: bf16 logits, multiple fully-aligned grid blocks (small block_rows to
    # exercise the pipeline; no mask code emitted at all on this path).
    N3 = 3 * 32 * 128
    logits3 = (jax.random.normal(k5, (N3,), dtype=jnp.float32) * 2.0).astype(jnp.bfloat16)
    targets3 = (jax.random.uniform(k6, (N3,)) > 0.5).astype(jnp.float32)
    out3 = jax.block_until_ready(focal_loss_pallas(logits3, targets3, block_rows=32))
    ref3 = _focal_loss_ref(logits3, targets3)
    assert jnp.allclose(out3, ref3, rtol=1e-4, atol=1e-6), (out3, ref3)

    print("KERNEL_OK")
</pallas_src>

<mosaic_0001>
module attributes {stable_mosaic.version = 11 : i64} {
  func.func @_focal_partial_kernel(%arg0: i32, %arg1: memref<32x128xf32, #tpu.memory_space<vmem>>, %arg2: memref<32x128xf32, #tpu.memory_space<vmem>>, %arg3: memref<8x128xf32, #tpu.memory_space<vmem>>) attributes {dimension_semantics = [#tpu.dimension_semantics<parallel>], iteration_bounds = array<i64: 1>, scalar_prefetch = 0 : i64, scratch_operands = 0 : i64, tpu.core_type = #tpu.core_type<tc>, window_params = [{transform_indices = @transform_0, window_bounds = array<i64: 32, 128>}, {transform_indices = @transform_1, window_bounds = array<i64: 32, 128>}, {transform_indices = @transform_2, window_bounds = array<i64: 8, 128>}]} {
    %c0 = arith.constant 0 : index
    %c0_0 = arith.constant 0 : index
    %0 = vector.load %arg1[%c0, %c0_0] : memref<32x128xf32, #tpu.memory_space<vmem>>, vector<32x128xf32>
    %c0_1 = arith.constant 0 : index
    %c0_2 = arith.constant 0 : index
    %1 = vector.load %arg2[%c0_1, %c0_2] : memref<32x128xf32, #tpu.memory_space<vmem>>, vector<32x128xf32>
    %cst = arith.constant 0.000000e+00 : f32
    %2 = vector.broadcast %cst : f32 to vector<32x128xf32>
    %3 = arith.maximumf %0, %2 : vector<32x128xf32>
    %4 = arith.mulf %0, %1 : vector<32x128xf32>
    %5 = arith.subf %3, %4 : vector<32x128xf32>
    %6 = math.absf %0 : vector<32x128xf32>
    %cst_3 = arith.constant 0.000000e+00 : f32
    %7 = vector.broadcast %cst_3 : f32 to vector<32x128xf32>
    %8 = arith.subf %7, %6 : vector<32x128xf32>
    %9 = math.exp %8 : vector<32x128xf32>
    %10 = math.log1p %9 : vector<32x128xf32>
    %11 = arith.addf %5, %10 : vector<32x128xf32>
    %cst_4 = arith.constant 0.000000e+00 : f32
    %12 = vector.broadcast %cst_4 : f32 to vector<32x128xf32>
    %13 = arith.subf %12, %11 : vector<32x128xf32>
    %14 = math.exp %13 : vector<32x128xf32>
    %cst_5 = arith.constant 1.000000e+00 : f32
    %15 = vector.broadcast %cst_5 : f32 to vector<32x128xf32>
    %16 = arith.subf %15, %14 : vector<32x128xf32>
    %17 = arith.mulf %16, %16 : vector<32x128xf32>
    %cst_6 = arith.constant 5.000000e-01 : f32
    %18 = vector.broadcast %cst_6 : f32 to vector<32x128xf32>
    %19 = arith.mulf %18, %1 : vector<32x128xf32>
    %cst_7 = arith.constant 2.500000e-01 : f32
    %20 = vector.broadcast %cst_7 : f32 to vector<32x128xf32>
    %21 = arith.addf %20, %19 : vector<32x128xf32>
    %22 = arith.mulf %21, %17 : vector<32x128xf32>
    %23 = arith.mulf %22, %11 : vector<32x128xf32>
    %24 = tpu.iota {dimensions = array<i32: 0>} : vector<32x128xi32>
    %25 = tpu.iota {dimensions = array<i32: 1>} : vector<32x128xi32>
    %c128_i32 = arith.constant 128 : i32
    %26 = vector.broadcast %c128_i32 : i32 to vector<32x128xi32>
    %27 = arith.muli %24, %26 : vector<32x128xi32>
    %28 = arith.addi %27, %25 : vector<32x128xi32>
    %c2048_i32 = arith.constant 2048 : i32
    %29 = vector.broadcast %c2048_i32 : i32 to vector<32x128xi32>
    %30 = arith.cmpi slt, %28, %29 : vector<32x128xi32>
    %cst_8 = arith.constant 0.000000e+00 : f32
    %31 = vector.broadcast %cst_8 : f32 to vector<32x128xf32>
    %32 = arith.select %30, %23, %31 : vector<32x128xi1>, vector<32x128xf32>
    %33 = vector.shape_cast %32 : vector<32x128xf32> to vector<4x8x128xf32>
    %cst_9 = arith.constant dense<0.000000e+00> : vector<8x128xf32>
    %34 = vector.multi_reduction <add>, %33, %cst_9 [0] : vector<4x8x128xf32> to vector<8x128xf32>
    %c0_10 = arith.constant 0 : index
    %c0_11 = arith.constant 0 : index
    %35 = vector.load %arg3[%c0_10, %c0_11] : memref<8x128xf32, #tpu.memory_space<vmem>>, vector<8x128xf32>
    tpu.vector_store %arg3[%c0_10, %c0_11], %34 {strides = array<i32>} : memref<8x128xf32, #tpu.memory_space<vmem>>, vector<8x128xf32>,
    return
  }
  func.func @transform_0(%arg0: i32) -> (i32, i32) {
    %c0_i32 = arith.constant 0 : i32
    %c0_i32_0 = arith.constant 0 : i32
    return %arg0, %c0_i32 : i32, i32
  }
  func.func @transform_1(%arg0: i32) -> (i32, i32) {
    %c0_i32 = arith.constant 0 : i32
    %c0_i32_0 = arith.constant 0 : i32
    return %arg0, %c0_i32 : i32, i32
  }
  func.func @transform_2(%arg0: i32) -> (i32, i32) {
    %c0_i32 = arith.constant 0 : i32
    %c0_i32_0 = arith.constant 0 : i32
    return %arg0, %c0_i32 : i32, i32
  }
}

</mosaic_0001>

<llo_original>
// kernel: tpu_custom_call.1
$region0: #{tpu_custom_call.1}
  #allocation0 [shape = 'u32[]', space=smem, size = 0x4, offset = 0x4, fixed_abs, tag = 'smem constant byte address 0x4 - core index']
  #allocation1 [shape = 'u32[72,128]{1,0:T(1,128)}', space=vmem, size = 0x9000, scoped, tag = 'internal scratch']
  %s0 = inlined_call_operand.hbm [shape: f32[16,128], index: 0, kind: input, shape index: {}]
  %s1 = inlined_call_operand.hbm [shape: f32[16,128], index: 1, kind: input, shape index: {}]
  %s2 = inlined_call_operand.hbm [shape: f32[8,128], index: 2, kind: output, shape index: {}]
  %s3 = sld [smem:[#allocation0]]
  $region26: #{tpu_custom_call.1} parent=0
    _
  %s5 = ssub.s32 1, %s3
  %s6 = scalar_select 0, %s5, %s3
  $region1: #{tpu_custom_call.1} parent=0
    #allocation2 [shape = 'u8[16384]{0}', space=vmem, size = 0x4000, scoped, tag = 'input window, operand 0, single buffered']
    #allocation3 [shape = 's32[1]{0}', space=sflag, size = 0x4, scoped, tag = 'scoped memory for tpu_custom_call.1']
    #allocation4 [shape = 's32[1]{0}', space=sflag, size = 0x4, scoped, tag = 'scoped memory for tpu_custom_call.1']
    #allocation5 [shape = 'u8[16384]{0}', space=vmem, size = 0x4000, scoped, tag = 'input window, operand 1, single buffered']
    #allocation6 [shape = 's32[1]{0}', space=sflag, size = 0x4, scoped, tag = 'scoped memory for tpu_custom_call.1']
    #allocation7 [shape = 'u8[4096]{0}', space=vmem, size = 0x1000, scoped, tag = 'output window, operand 0, single buffered']
    %7 = vsyncpa [#allocation3], 0
    %8 = vsyncpa [#allocation6], 0
    %9 = vsyncpa [#allocation4], 0
    // Predicated region
    $region2: #{tpu_custom_call.1} parent=1 // pred_check
      _
    $region3: #{tpu_custom_call.1} parent=1 // pred_check_branch
      %11 = sbr.rel (0) target = $region5
    $region4: #{tpu_custom_call.1} parent=1 // pred_region
      %13 = vsyncadd [#allocation3], 256
      %s14 = sshll.u32 %s0, 4
      %s15 = int_to_ptr.hbm [resolvable:$true] %s14
      %s16 = sshll.u32 [#allocation2], 4
      %s17 = int_to_ptr.vmem [resolvable:$true] %s16
      %22 = dma.hbm_to_vmem [thread:$0]  %s15, 256, %s17, [#allocation3], 128, 128, 8
    $region5: #{tpu_custom_call.1} parent=1 // pred_fallthru
      _
    // Predicated region
    $region6: #{tpu_custom_call.1} parent=1 // pred_check
      _
    $region7: #{tpu_custom_call.1} parent=1 // pred_check_branch
      %24 = sbr.rel (0) target = $region9
    $region8: #{tpu_custom_call.1} parent=1 // pred_region
      %26 = vsyncadd [#allocation6], 256
      %s27 = sshll.u32 %s1, 4
      %s28 = int_to_ptr.hbm [resolvable:$true] %s27
      %s29 = sshll.u32 [#allocation5], 4
      %s30 = int_to_ptr.vmem [resolvable:$true] %s29
      %35 = dma.hbm_to_vmem [thread:$0]  %s28, 256, %s30, [#allocation6], 128, 128, 8
    $region9: #{tpu_custom_call.1} parent=1 // pred_fallthru
      _
    // Predicated region
    $region10: #{tpu_custom_call.1} parent=1 // pred_check
      _
    $region11: #{tpu_custom_call.1} parent=1 // pred_check_branch
      %37 = sbr.rel (0) target = $region13
    $region12: #{tpu_custom_call.1} parent=1 // pred_region
      %39 = dma.done [#allocation3], 512
    $region13: #{tpu_custom_call.1} parent=1 // pred_fallthru
      _
    // Predicated region
    $region14: #{tpu_custom_call.1} parent=1 // pred_check
      _
    $region15: #{tpu_custom_call.1} parent=1 // pred_check_branch
      %41 = sbr.rel (0) target = $region17
    $region16: #{tpu_custom_call.1} parent=1 // pred_region
      %43 = dma.done [#allocation6], 512
    $region17: #{tpu_custom_call.1} parent=1 // pred_fallthru
      _
    %v44 = vld [vmem:[#allocation2] sm:$0xff]
    %v45 = vld [vmem:[#allocation2 + $0x8] sm:$0xff]
    %v46 = vld [vmem:[#allocation2 + $0x10] sm:$0xff]
    %v47 = vld [vmem:[#allocation2 + $0x18] sm:$0xff]
    %v48 = vld [vmem:[#allocation5] sm:$0xff]
    %v49 = vld [vmem:[#allocation5 + $0x8] sm:$0xff]
    %v50 = vld [vmem:[#allocation5 + $0x10] sm:$0xff]
    %v51 = vld [vmem:[#allocation5 + $0x18] sm:$0xff]
    %v52 = vmax.f32 %v44, 0.0
    %v53 = vmax.f32 %v45, 0.0
    %v54 = vmax.f32 %v46, 0.0
    %v55 = vmax.f32 %v47, 0.0
    %v56 = vmul.f32 %v44, %v48
    %v57 = vmul.f32 %v45, %v49
    %v58 = vmul.f32 %v46, %v50
    %v59 = vmul.f32 %v47, %v51
    %v60 = vsub.f32 %v52, %v56
    %v61 = vsub.f32 %v53, %v57
    %v62 = vsub.f32 %v54, %v58
    %v63 = vsub.f32 %v55, %v59
    %v64 = vand.u32 2147483647, %v44
    %v65 = vand.u32 2147483647, %v45
    %v66 = vand.u32 2147483647, %v46
    %v67 = vand.u32 2147483647, %v47
    %v68 = vsub.f32 0.0, %v64
    %v69 = vsub.f32 0.0, %v65
    %v70 = vsub.f32 0.0, %v66
    %v71 = vsub.f32 0.0, %v67
    %v72 = vmul.f32 %v68, 1.442695
    %v73 = vpow.pop %v72
    %v74 = vmul.f32 %v69, 1.442695
    %v75 = vpow.pop %v74
    %v76 = vmul.f32 %v70, 1.442695
    %v77 = vpow.pop %v76
    %v78 = vmul.f32 %v71, 1.442695
    %v79 = vpow.pop %v78
    %v80 = vadd.f32 %v73, 1.0
    %v81 = vlog2.pop %v80
    %v82 = vmul.f32 %v81, 0.6931472
    %v83 = vmul.f32 -0.5, %v73
    %v84 = vadd.f32 %v83, 1.0
    %v85 = vmul.f32 %v84, %v73
    %v86 = vand.u32 2147483647, %v73
    %vm87 = vcmp.lt.f32.partialorder %v86, 0.0004427343
    %v88 = vsel %vm87, %v85, %v82
    %v89 = vadd.f32 %v75, 1.0
    %v90 = vlog2.pop %v89
    %v91 = vmul.f32 %v90, 0.6931472
    %v92 = vmul.f32 -0.5, %v75
    %v93 = vadd.f32 %v92, 1.0
    %v94 = vmul.f32 %v93, %v75
    %v95 = vand.u32 2147483647, %v75
    %vm96 = vcmp.lt.f32.partialorder %v95, 0.0004427343
    %v97 = vsel %vm96, %v94, %v91
    %v98 = vadd.f32 %v77, 1.0
    %v99 = vlog2.pop %v98
    %v100 = vmul.f32 %v99, 0.6931472
    %v101 = vmul.f32 -0.5, %v77
    %v102 = vadd.f32 %v101, 1.0
    %v103 = vmul.f32 %v102, %v77
    %v104 = vand.u32 2147483647, %v77
    %vm105 = vcmp.lt.f32.partialorder %v104, 0.0004427343
    %v106 = vsel %vm105, %v103, %v100
    %v107 = vadd.f32 %v79, 1.0
    %v108 = vlog2.pop %v107
    %v109 = vmul.f32 %v108, 0.6931472
    %v110 = vmul.f32 -0.5, %v79
    %v111 = vadd.f32 %v110, 1.0
    %v112 = vmul.f32 %v111, %v79
    %v113 = vand.u32 2147483647, %v79
    %vm114 = vcmp.lt.f32.partialorder %v113, 0.0004427343
    %v115 = vsel %vm114, %v112, %v109
    %v116 = vadd.f32 %v60, %v88
    %v117 = vadd.f32 %v61, %v97
    %v118 = vadd.f32 %v62, %v106
    %v119 = vadd.f32 %v63, %v115
    %v120 = vsub.f32 0.0, %v116
    %v121 = vsub.f32 0.0, %v117
    %v122 = vsub.f32 0.0, %v118
    %v123 = vsub.f32 0.0, %v119
    %v124 = vmul.f32 %v120, 1.442695
    %v125 = vpow.pop %v124
    %v126 = vmul.f32 %v121, 1.442695
    %v127 = vpow.pop %v126
    %v128 = vmul.f32 %v122, 1.442695
    %v129 = vpow.pop %v128
    %v130 = vmul.f32 %v123, 1.442695
    %v131 = vpow.pop %v130
    %v132 = vsub.f32 1.0, %v125
    %v133 = vsub.f32 1.0, %v127
    %v134 = vsub.f32 1.0, %v129
    %v135 = vsub.f32 1.0, %v131
    %v136 = vmul.f32 %v132, %v132
    %v137 = vmul.f32 %v133, %v133
    %v138 = vmul.f32 %v134, %v134
    %v139 = vmul.f32 %v135, %v135
    %v140 = vmul.f32 %v48, 0.5
    %v141 = vmul.f32 %v49, 0.5
    %v142 = vmul.f32 %v50, 0.5
    %v143 = vmul.f32 %v51, 0.5
    %v144 = vadd.f32 %v140, 0.25
    %v145 = vadd.f32 %v141, 0.25
    %v146 = vadd.f32 %v142, 0.25
    %v147 = vadd.f32 %v143, 0.25
    %v148 = vmul.f32 %v144, %v136
    %v149 = vmul.f32 %v145, %v137
    %v150 = vmul.f32 %v146, %v138
    %v151 = vmul.f32 %v147, %v139
    %v152 = vmul.f32 %v148, %v116
    %v153 = vmul.f32 %v149, %v117
    %v154 = vmul.f32 %v150, %v118
    %v155 = vmul.f32 %v151, %v119
    %v156 = vlaneseq
    %v157 = vshrl.u32 %v156, 7
    %v158 = vadd.s32 %v157, 8
    %v159 = vadd.s32 %v157, 16
    %v160 = vadd.s32 %v157, 24
    %v161 = vlaneseq
    %v162 = vand.u32 %v161, 127
    %v163 = vmul.u32 %v157, 128
    %v164 = vmul.u32 %v158, 128
    %v165 = vmul.u32 %v159, 128
    %v166 = vmul.u32 %v160, 128
    %v167 = vadd.s32 %v163, %v162
    %v168 = vadd.s32 %v164, %v162
    %v169 = vadd.s32 %v165, %v162
    %v170 = vadd.s32 %v166, %v162
    %vm171 = vcmp.lt.s32.totalorder %v167, 2048
    %vm172 = vcmp.lt.s32.totalorder %v168, 2048
    %vm173 = vcmp.lt.s32.totalorder %v169, 2048
    %vm174 = vcmp.lt.s32.totalorder %v170, 2048
    %v175 = vsel %vm171, %v152, 0.0
    %v176 = vsel %vm172, %v153, 0.0
    %v177 = vsel %vm173, %v154, 0.0
    %v178 = vsel %vm174, %v155, 0.0
    %v179 = vadd.f32 %v175, %v176
    %v180 = vadd.f32 %v179, %v177
    %v181 = vadd.f32 %v180, %v178
    %182 = vst [vmem:[#allocation7] sm:$0xff] %v181
    // Predicated region
    $region18: #{tpu_custom_call.1} parent=1 // pred_check
      _
    $region19: #{tpu_custom_call.1} parent=1 // pred_check_branch
      %184 = sbr.rel (0) target = $region21
    $region20: #{tpu_custom_call.1} parent=1 // pred_region
      %186 = vsyncadd [#allocation4], 0
      %s188 = sshll.u32 [#allocation7], 4
      %s189 = int_to_ptr.vmem [resolvable:$true] %s188
      %s190 = sshll.u32 %s2, 4
      %s191 = int_to_ptr.hbm [resolvable:$true] %s190
      %193 = dma.vmem_to_hbm [thread:$0]  %s189, 128, %s191, [#allocation4]
    $region21: #{tpu_custom_call.1} parent=1 // pred_fallthru
      _
    // Predicated region
    $region22: #{tpu_custom_call.1} parent=1 // pred_check
      _
    $region23: #{tpu_custom_call.1} parent=1 // pred_check_branch
      %195 = sbr.rel (0) target = $region25
    $region24: #{tpu_custom_call.1} parent=1 // pred_region
      %197 = dma.done [#allocation4], 128
    $region25: #{tpu_custom_call.1} parent=1 // pred_fallthru
      _
    %198 = vsyncpa [#allocation3], 1
    %199 = vsyncpa [#allocation6], 1
    %200 = vsyncpa [#allocation4], 1

</llo_original>
